<compile_context>
chip_gen: v7x
topology: tpu7x:2x2x1
jax: 0.10.0
libtpu: 0.0.40
codegen_flags: <defaults>
</compile_context>

<pallas_src>
import functools

import jax
import jax.numpy as jnp
from jax.experimental import pallas as pl
from jax.experimental.pallas import tpu as pltpu

LANES = 128
MAX_BLOCK_ROWS = 8192                 # (8192, 128) f32 = 4 MiB per input per buffer
VMEM_LIMIT_BYTES = 32 * 1024 * 1024   # >= default on every gen, <= physical on every gen


def _focal_kernel(x_ref, t_ref, out_ref, *,
                  alpha, gamma, eps, tail_valid, needs_mask):
    step = pl.program_id(0)

    # Zero the VMEM-resident (8, 128) partial-sum slab once at the start of
    # the reduction sweep (same output block across the whole grid).
    @pl.when(step == 0)
    def _():
        out_ref[...] = jnp.zeros_like(out_ref)

    block_rows, lanes = x_ref.shape

    # In-kernel cast of the logits (VPU); targets stay in their native dtype,
    # they are only needed for the == 1 compare.
    x = x_ref[...].astype(jnp.float32)
    is_one = t_ref[...] == 1            # matches torch.where(targets == 1, ...)

    prob = jax.nn.sigmoid(x)
    pt = jnp.where(is_one, prob, 1.0 - prob)
    at = jnp.where(is_one, jnp.float32(alpha), jnp.float32(1.0 - alpha))

    one_minus_pt = 1.0 - pt
    if gamma == 2.0:                    # never fall back to power for integer gamma
        focal = one_minus_pt * one_minus_pt
    elif gamma == 1.0:
        focal = one_minus_pt
    else:
        focal = jnp.power(one_minus_pt, jnp.float32(gamma))

    loss = -at * focal * jnp.log(pt + jnp.float32(eps))

    def accumulate(l):
        # (block_rows, 128) -> (8, 128) with pure vreg+vreg adds (VPU only; the
        # trailing (8, 128) slices are exact vreg tiles), accumulated into the
        # resident output slab.  The single cross-lane reduce happens outside.
        out_ref[...] += jnp.sum(l.reshape(block_rows // 8, 8, lanes), axis=0)

    if needs_mask:
        # Invalid elements (flat pad to 128 and/or Pallas boundary padding of
        # the last partial block) only ever live in the LAST grid step, and
        # the number of valid elements in that step (tail_valid) is a static
        # compile-time constant.  Gate the mask at runtime so every other
        # step pays zero extra VPU work.
        is_last = step == pl.num_programs(0) - 1

        @pl.when(jnp.logical_not(is_last))
        def _():
            accumulate(loss)

        @pl.when(is_last)
        def _():
            local_idx = (
                jax.lax.broadcasted_iota(jnp.int32, (block_rows, lanes), 0) * lanes
                + jax.lax.broadcasted_iota(jnp.int32, (block_rows, lanes), 1))
            accumulate(jnp.where(local_idx < tail_valid, loss, jnp.float32(0.0)))
    else:
        accumulate(loss)


def focal_loss(inputs, targets, *, alpha=0.25, gamma=2.0, eps=1e-6):
    """Pallas TPU implementation of FocalLoss.forward. Returns a scalar f32."""
    x = jnp.ravel(inputs)              # native dtype, no host-side cast
    t = jnp.ravel(targets)
    n = int(x.shape[0])

    # Only pad the sub-128 flat remainder (tiny), never to block alignment.
    # When n % 128 == 0 (typical segmentation shapes) this path is copy-free.
    pad = (-n) % LANES
    if pad:
        x = jnp.pad(x, (0, pad))
        t = jnp.pad(t, (0, pad))
    rows = (n + pad) // LANES

    block_rows = min(MAX_BLOCK_ROWS, ((rows + 7) // 8) * 8)  # multiple of 8 sublanes
    num_blocks = -(-rows // block_rows)                       # cdiv; partial last block OK
    block_elems = block_rows * LANES
    covered = num_blocks * block_elems
    needs_mask = covered != n                  # pad zeros or boundary garbage present
    tail_valid = n - (num_blocks - 1) * block_elems  # valid elements in the last block

    x2 = x.reshape(rows, LANES)
    t2 = t.reshape(rows, LANES)

    kernel = functools.partial(
        _focal_kernel,
        alpha=float(alpha), gamma=float(gamma), eps=float(eps),
        tail_valid=int(tail_valid), needs_mask=bool(needs_mask))

    partials = pl.pallas_call(
        kernel,
        out_shape=jax.ShapeDtypeStruct((8, LANES), jnp.float32),
        grid_spec=pltpu.PrefetchScalarGridSpec(
            num_scalar_prefetch=0,
            grid=(num_blocks,),
            in_specs=[
                pl.BlockSpec((block_rows, LANES), lambda i: (i, 0)),
                pl.BlockSpec((block_rows, LANES), lambda i: (i, 0)),
            ],
            # Same output block every step -> VMEM-resident (8, 128) accumulator.
            out_specs=pl.BlockSpec((8, LANES), lambda i: (0, 0)),
        ),
        compiler_params=pltpu.CompilerParams(
            dimension_semantics=("arbitrary",),
            vmem_limit_bytes=VMEM_LIMIT_BYTES),
    )(x2, t2)

    # Tiny final cross-lane reduce + mean scaling outside the kernel.
    return jnp.sum(partials) * jnp.float32(1.0 / n)


def _focal_loss_ref(inputs, targets, alpha=0.25, gamma=2.0, eps=1e-6):
    p = jax.nn.sigmoid(jnp.ravel(inputs).astype(jnp.float32))
    t = jnp.ravel(targets).astype(jnp.float32)
    pt = jnp.where(t == 1.0, p, 1.0 - p)
    at = jnp.where(t == 1.0, alpha, 1.0 - alpha)
    loss = -at * (1.0 - pt) ** gamma * jnp.log(pt + eps)
    return jnp.mean(loss)


if __name__ == "__main__":
    key = jax.random.PRNGKey(0)
    k1, k2, k3, k4 = jax.random.split(key, 4)

    # NCHW, small segmentation-like shapes (lane-aligned case: zero copies).
    B, C, H, W = 2, 4, 16, 16
    inputs = jax.random.normal(k1, (B, C, H, W), dtype=jnp.float32)   # logits
    targets = (jax.random.uniform(k2, (B, C, H, W)) > 0.5).astype(jnp.float32)

    out = jax.block_until_ready(focal_loss(inputs, targets))
    ref = _focal_loss_ref(inputs, targets)
    assert jnp.allclose(out, ref, rtol=1e-5, atol=1e-6), (out, ref)

    # Ragged case (not a multiple of 128) exercises the runtime-gated tail mask.
    B2, C2, H2, W2 = 2, 3, 17, 19
    inputs2 = jax.random.normal(k3, (B2, C2, H2, W2), dtype=jnp.float32)
    targets2 = (jax.random.uniform(k4, (B2, C2, H2, W2)) > 0.5).astype(jnp.float32)

    out2 = jax.block_until_ready(focal_loss(inputs2, targets2))
    ref2 = _focal_loss_ref(inputs2, targets2)
    assert jnp.allclose(out2, ref2, rtol=1e-5, atol=1e-6), (out2, ref2)

    print("KERNEL_OK")
</pallas_src>

<mosaic_0001>
module attributes {stable_mosaic.version = 11 : i64} {
  func.func @_focal_kernel(%arg0: i32, %arg1: memref<16x128xf32, #tpu.memory_space<vmem>>, %arg2: memref<16x128xf32, #tpu.memory_space<vmem>>, %arg3: memref<8x128xf32, #tpu.memory_space<vmem>>) attributes {dimension_semantics = [#tpu.dimension_semantics<arbitrary>], iteration_bounds = array<i64: 1>, scalar_prefetch = 0 : i64, scratch_operands = 0 : i64, tpu.core_type = #tpu.core_type<tc>, window_params = [{transform_indices = @transform_0, window_bounds = array<i64: 16, 128>}, {transform_indices = @transform_1, window_bounds = array<i64: 16, 128>}, {pipeline_mode = #tpu.pipeline_mode<synchronous>, transform_indices = @transform_2, window_bounds = array<i64: 8, 128>}]} {
    %c0_i32 = arith.constant 0 : i32
    %0 = arith.cmpi eq, %arg0, %c0_i32 : i32
    %1 = arith.extui %0 : i1 to i32
    %c0_i32_0 = arith.constant 0 : i32
    %2 = arith.cmpi ne, %1, %c0_i32_0 : i32
    scf.if %2 {
      %cst_16 = arith.constant 0.000000e+00 : f32
      %33 = vector.broadcast %cst_16 : f32 to vector<8x128xf32>
      %c0_17 = arith.constant 0 : index
      %c0_18 = arith.constant 0 : index
      %34 = vector.load %arg3[%c0_17, %c0_18] : memref<8x128xf32, #tpu.memory_space<vmem>>, vector<8x128xf32>
      tpu.vector_store %arg3[%c0_17, %c0_18], %33 {strides = array<i32>} : memref<8x128xf32, #tpu.memory_space<vmem>>, vector<8x128xf32>,
    } else {
    }
    %c0 = arith.constant 0 : index
    %c0_1 = arith.constant 0 : index
    %3 = vector.load %arg1[%c0, %c0_1] : memref<16x128xf32, #tpu.memory_space<vmem>>, vector<16x128xf32>
    %c0_2 = arith.constant 0 : index
    %c0_3 = arith.constant 0 : index
    %4 = vector.load %arg2[%c0_2, %c0_3] : memref<16x128xf32, #tpu.memory_space<vmem>>, vector<16x128xf32>
    %cst = arith.constant 1.000000e+00 : f32
    %5 = vector.broadcast %cst : f32 to vector<16x128xf32>
    %6 = arith.cmpf oeq, %4, %5 : vector<16x128xf32>
    %7 = arith.negf %3 : vector<16x128xf32>
    %8 = math.exp %7 : vector<16x128xf32>
    %cst_4 = arith.constant 1.000000e+00 : f32
    %9 = vector.broadcast %cst_4 : f32 to vector<16x128xf32>
    %10 = arith.addf %9, %8 : vector<16x128xf32>
    %11 = arith.divf %9, %10 : vector<16x128xf32>
    %cst_5 = arith.constant 1.000000e+00 : f32
    %12 = vector.broadcast %cst_5 : f32 to vector<16x128xf32>
    %13 = arith.subf %12, %11 : vector<16x128xf32>
    %14 = arith.select %6, %11, %13 : vector<16x128xi1>, vector<16x128xf32>
    %cst_6 = arith.constant 2.500000e-01 : f32
    %cst_7 = arith.constant 7.500000e-01 : f32
    %15 = vector.broadcast %cst_6 : f32 to vector<16x128xf32>
    %16 = vector.broadcast %cst_7 : f32 to vector<16x128xf32>
    %17 = arith.select %6, %15, %16 : vector<16x128xi1>, vector<16x128xf32>
    %cst_8 = arith.constant 1.000000e+00 : f32
    %18 = vector.broadcast %cst_8 : f32 to vector<16x128xf32>
    %19 = arith.subf %18, %14 : vector<16x128xf32>
    %20 = arith.mulf %19, %19 : vector<16x128xf32>
    %cst_9 = arith.constant 0.000000e+00 : f32
    %21 = vector.broadcast %cst_9 : f32 to vector<16x128xf32>
    %22 = arith.subf %21, %17 : vector<16x128xf32>
    %23 = arith.mulf %22, %20 : vector<16x128xf32>
    %cst_10 = arith.constant 9.99999997E-7 : f32
    %24 = vector.broadcast %cst_10 : f32 to vector<16x128xf32>
    %25 = arith.addf %14, %24 : vector<16x128xf32>
    %26 = math.log %25 : vector<16x128xf32>
    %27 = arith.mulf %23, %26 : vector<16x128xf32>
    %c0_11 = arith.constant 0 : index
    %c0_12 = arith.constant 0 : index
    %28 = vector.load %arg3[%c0_11, %c0_12] : memref<8x128xf32, #tpu.memory_space<vmem>>, vector<8x128xf32>
    %29 = vector.shape_cast %27 : vector<16x128xf32> to vector<2x8x128xf32>
    %cst_13 = arith.constant dense<0.000000e+00> : vector<8x128xf32>
    %30 = vector.multi_reduction <add>, %29, %cst_13 [0] : vector<2x8x128xf32> to vector<8x128xf32>
    %31 = arith.addf %28, %30 : vector<8x128xf32>
    %c0_14 = arith.constant 0 : index
    %c0_15 = arith.constant 0 : index
    %32 = vector.load %arg3[%c0_14, %c0_15] : memref<8x128xf32, #tpu.memory_space<vmem>>, vector<8x128xf32>
    tpu.vector_store %arg3[%c0_14, %c0_15], %31 {strides = array<i32>} : memref<8x128xf32, #tpu.memory_space<vmem>>, vector<8x128xf32>,
    return
  }
  func.func @transform_0(%arg0: i32) -> (i32, i32) {
    %c0_i32 = arith.constant 0 : i32
    %c0_i32_0 = arith.constant 0 : i32
    return %arg0, %c0_i32 : i32, i32
  }
  func.func @transform_1(%arg0: i32) -> (i32, i32) {
    %c0_i32 = arith.constant 0 : i32
    %c0_i32_0 = arith.constant 0 : i32
    return %arg0, %c0_i32 : i32, i32
  }
  func.func @transform_2(%arg0: i32) -> (i32, i32) {
    %c0_i32 = arith.constant 0 : i32
    %c0_i32_0 = arith.constant 0 : i32
    %c0_i32_1 = arith.constant 0 : i32
    return %c0_i32, %c0_i32_0 : i32, i32
  }
}

</mosaic_0001>

<llo_original>
// kernel: tpu_custom_call.1
$region0: #{tpu_custom_call.1}
  #allocation0 [shape = 'u32[]', space=smem, size = 0x4, offset = 0x4, fixed_abs, tag = 'smem constant byte address 0x4 - core index']
  #allocation1 [shape = 'u32[144,128]{1,0:T(1,128)}', space=vmem, size = 0x12000, scoped, tag = 'internal scratch']
  %s0 = inlined_call_operand.hbm [shape: f32[16,128], index: 0, kind: input, shape index: {}]
  %s1 = inlined_call_operand.hbm [shape: f32[16,128], index: 1, kind: input, shape index: {}]
  %s2 = inlined_call_operand.hbm [shape: f32[8,128], index: 2, kind: output, shape index: {}]
  %s3 = sld [smem:[#allocation0]]
  $region30: #{tpu_custom_call.1} parent=0
    _
  %s5 = ssub.s32 1, %s3
  %s6 = scalar_select 0, %s5, %s3
  $region1: #{tpu_custom_call.1} parent=0
    #allocation2 [shape = 'u8[8192]{0}', space=vmem, size = 0x2000, scoped, tag = 'input window, operand 0, single buffered']
    #allocation3 [shape = 's32[1]{0}', space=sflag, size = 0x4, scoped, tag = 'scoped memory for tpu_custom_call.1']
    #allocation4 [shape = 's32[1]{0}', space=sflag, size = 0x4, scoped, tag = 'scoped memory for tpu_custom_call.1']
    #allocation5 [shape = 'u8[8192]{0}', space=vmem, size = 0x2000, scoped, tag = 'input window, operand 1, single buffered']
    #allocation6 [shape = 's32[1]{0}', space=sflag, size = 0x4, scoped, tag = 'scoped memory for tpu_custom_call.1']
    #allocation7 [shape = 'u8[4096]{0}', space=vmem, size = 0x1000, scoped, tag = 'output window, operand 0, single buffered']
    %7 = vsyncpa [#allocation3], 0
    %8 = vsyncpa [#allocation6], 0
    %9 = vsyncpa [#allocation4], 0
    // Predicated region
    $region2: #{tpu_custom_call.1} parent=1 // pred_check
      _
    $region3: #{tpu_custom_call.1} parent=1 // pred_check_branch
      %11 = sbr.rel (0) target = $region5
    $region4: #{tpu_custom_call.1} parent=1 // pred_region
      %s13 = ssub.s32 256, 256
      %14 = vsyncadd [#allocation3], %s13
      %s15 = sshll.u32 [#allocation2], 4
      %s16 = int_to_ptr.vmem [resolvable:$true] %s15
      %21 = dma.hbm_to_vmem [thread:$0]  %s0, 256, %s16, [#allocation3], 128, 128, 8
    $region5: #{tpu_custom_call.1} parent=1 // pred_fallthru
      _
    // Predicated region
    $region6: #{tpu_custom_call.1} parent=1 // pred_check
      _
    $region7: #{tpu_custom_call.1} parent=1 // pred_check_branch
      %23 = sbr.rel (0) target = $region9
    $region8: #{tpu_custom_call.1} parent=1 // pred_region
      %s25 = ssub.s32 256, 256
      %26 = vsyncadd [#allocation6], %s25
      %s27 = sshll.u32 [#allocation5], 4
      %s28 = int_to_ptr.vmem [resolvable:$true] %s27
      %33 = dma.hbm_to_vmem [thread:$0]  %s1, 256, %s28, [#allocation6], 128, 128, 8
    $region9: #{tpu_custom_call.1} parent=1 // pred_fallthru
      _
    // Predicated region
    $region10: #{tpu_custom_call.1} parent=1 // pred_check
      _
    $region11: #{tpu_custom_call.1} parent=1 // pred_check_branch
      %35 = sbr.rel (0) target = $region13
    $region12: #{tpu_custom_call.1} parent=1 // pred_region
      %36 = dma.done [#allocation3], 256
    $region13: #{tpu_custom_call.1} parent=1 // pred_fallthru
      _
    // Predicated region
    $region14: #{tpu_custom_call.1} parent=1 // pred_check
      _
    $region15: #{tpu_custom_call.1} parent=1 // pred_check_branch
      %38 = sbr.rel (0) target = $region17
    $region16: #{tpu_custom_call.1} parent=1 // pred_region
      %39 = dma.done [#allocation6], 256
    $region17: #{tpu_custom_call.1} parent=1 // pred_fallthru
      _
    %p40 = scmp.eq.s32.totalorder 0, 0
    // Predicated region
    $region18: #{tpu_custom_call.1} parent=1 // pred_check
      %p41 = pneg %p40
    $region19: #{tpu_custom_call.1} parent=1 // pred_check_branch
      %43 = sbr.rel (%p41) target = $region21
    $region20: #{tpu_custom_call.1} parent=1 // pred_region
      %44 = vst [vmem:[#allocation7] sm:$0xff] 0.0
    $region21: #{tpu_custom_call.1} parent=1 // pred_fallthru
      _
    %v45 = vld [vmem:[#allocation2] sm:$0xff]
    %v46 = vld [vmem:[#allocation2 + $0x8] sm:$0xff]
    %v47 = vld [vmem:[#allocation5] sm:$0xff]
    %v48 = vld [vmem:[#allocation5 + $0x8] sm:$0xff]
    %vm49 = vcmp.eq.f32.partialorder %v47, 1.0
    %vm50 = vcmp.eq.f32.partialorder %v48, 1.0
    %v51 = vxor.u32 %v45, 2147483648
    %v52 = vxor.u32 %v46, 2147483648
    %v53 = vmul.f32 %v51, 1.442695
    %v54 = vpow.pop %v53
    %v55 = vmul.f32 %v52, 1.442695
    %v56 = vpow.pop %v55
    %v57 = vadd.f32 %v54, 1.0
    %v58 = vadd.f32 %v56, 1.0
    %v59 = vrcp.pop %v57
    %v60 = vmul.f32 1.0, %v59
    %v61 = vrcp.pop %v58
    %v62 = vmul.f32 1.0, %v61
    %v63 = vsub.f32 1.0, %v60
    %v64 = vsub.f32 1.0, %v62
    %v65 = vsel %vm49, %v60, %v63
    %v66 = vsel %vm50, %v62, %v64
    %v67 = vsel %vm49, 0.25, 0.75
    %v68 = vsel %vm50, 0.25, 0.75
    %v69 = vsub.f32 1.0, %v65
    %v70 = vsub.f32 1.0, %v66
    %v71 = vmul.f32 %v69, %v69
    %v72 = vmul.f32 %v70, %v70
    %v73 = vsub.f32 0.0, %v67
    %v74 = vsub.f32 0.0, %v68
    %v75 = vmul.f32 %v73, %v71
    %v76 = vmul.f32 %v74, %v72
    %v77 = vadd.f32 %v65, 1e-06
    %v78 = vadd.f32 %v66, 1e-06
    %v79 = vlog2.pop %v77
    %v80 = vmul.f32 %v79, 0.6931472
    %v81 = vlog2.pop %v78
    %v82 = vmul.f32 %v81, 0.6931472
    %v83 = vmul.f32 %v75, %v80
    %v84 = vmul.f32 %v76, %v82
    %v85 = vld [vmem:[#allocation7] sm:$0xff]
    %v86 = vadd.f32 %v83, %v84
    %v87 = vadd.f32 %v85, %v86
    %88 = vst [vmem:[#allocation7] sm:$0xff] %v87
    // Predicated region
    $region22: #{tpu_custom_call.1} parent=1 // pred_check
      _
    $region23: #{tpu_custom_call.1} parent=1 // pred_check_branch
      %90 = sbr.rel (0) target = $region25
    $region24: #{tpu_custom_call.1} parent=1 // pred_region
      %s92 = ssub.s32 128, 128
      %93 = vsyncadd [#allocation4], %s92
      %s95 = sshll.u32 [#allocation7], 4
      %s96 = int_to_ptr.vmem [resolvable:$true] %s95
      %98 = dma.vmem_to_hbm [thread:$0]  %s96, 128, %s2, [#allocation4]
    $region25: #{tpu_custom_call.1} parent=1 // pred_fallthru
      _
    // Predicated region
    $region26: #{tpu_custom_call.1} parent=1 // pred_check
      _
    $region27: #{tpu_custom_call.1} parent=1 // pred_check_branch
      %100 = sbr.rel (0) target = $region29
    $region28: #{tpu_custom_call.1} parent=1 // pred_region
      %101 = dma.done [#allocation4], 128
    $region29: #{tpu_custom_call.1} parent=1 // pred_fallthru
      _
    %102 = vsyncpa [#allocation3], 1
    %103 = vsyncpa [#allocation6], 1
    %104 = vsyncpa [#allocation4], 1

</llo_original>
